<compile_context>
chip_gen: v5e
topology: v5e:2x2
jax: 0.10.0
libtpu: 0.0.40
codegen_flags: <defaults>
</compile_context>

<pallas_src>
import math

import jax
import jax.numpy as jnp
from jax.experimental import pallas as pl
from jax.experimental.pallas import tpu as pltpu

_NEG_INF = -1e30  # large finite negative: exp() underflows to 0, no inf-arith NaNs


def _flash_attn_kernel(xq_ref, xkv_ref, wq_ref, wk_ref, wv_ref, o_ref,
                       q_sc, m_sc, l_sc, acc_sc):
    # xq_ref : (1, tq, D)  rows of x for the current q tile
    # xkv_ref: (1, tk, D)  rows of x for the current kv tile
    # wq/wk/wv_ref: (D, H)
    # o_ref  : (1, tq, H)
    # scratch: q_sc (tq, H) bf16, m_sc/l_sc (tq, 1) f32, acc_sc (tq, H) f32
    q_idx = pl.program_id(1)
    kv_idx = pl.program_id(2)

    tq = q_sc.shape[0]
    tk = xkv_ref.shape[1]
    H = q_sc.shape[1]
    scale = jnp.float32(1.0 / math.sqrt(float(H)))
    dt = xkv_ref.dtype  # compute dtype fed to the MXU (bf16)

    # ---- per-(batch, q-tile) init: project q once, reset softmax state ------
    @pl.when(kv_idx == 0)
    def _():
        xq = xq_ref[0]  # (tq, D)
        # bf16-in / f32-accumulate on the MXU; fold 1/sqrt(H) into the q
        # epilogue (tq*H multiplies instead of tq*tk on the scores).
        q = jnp.dot(xq, wq_ref[...], preferred_element_type=jnp.float32)
        q_sc[...] = (q * scale).astype(q_sc.dtype)
        m_sc[...] = jnp.full(m_sc.shape, _NEG_INF, m_sc.dtype)
        l_sc[...] = jnp.zeros(l_sc.shape, l_sc.dtype)
        acc_sc[...] = jnp.zeros(acc_sc.shape, acc_sc.dtype)

    # ---- causal tile skip: kv tiles strictly above the diagonal do no work --
    @pl.when(kv_idx <= q_idx)
    def _():
        xkv = xkv_ref[0]  # (tk, D)
        k = jnp.dot(xkv, wk_ref[...],
                    preferred_element_type=jnp.float32).astype(dt)
        v = jnp.dot(xkv, wv_ref[...],
                    preferred_element_type=jnp.float32).astype(dt)

        # Scores: contract the last (head) axis of both q and k -> (tq, tk).
        # No explicit transpose of k is materialized.
        s = jax.lax.dot_general(q_sc[...], k, (((1,), (1,)), ((), ())),
                                preferred_element_type=jnp.float32)

        # Causal mask built per-tile from global positions; it broadcasts over
        # batch for free and is trivially true on fully-below-diagonal tiles
        # (only the diagonal tile actually masks anything).
        rows = q_idx * tq + jax.lax.broadcasted_iota(jnp.int32, (tq, tk), 0)
        cols = kv_idx * tk + jax.lax.broadcasted_iota(jnp.int32, (tq, tk), 1)
        keep = jnp.logical_or(kv_idx < q_idx, cols <= rows)
        s = jnp.where(keep, s, jnp.float32(_NEG_INF))

        # Online (flash) softmax update; statistics in f32.
        m_prev = m_sc[...]
        m_new = jnp.maximum(m_prev, jnp.max(s, axis=-1, keepdims=True))
        alpha = jnp.exp(m_prev - m_new)
        p = jnp.exp(s - m_new)
        l_sc[...] = alpha * l_sc[...] + jnp.sum(p, axis=-1, keepdims=True)
        acc_sc[...] = alpha * acc_sc[...] + jnp.dot(
            p.astype(dt), v, preferred_element_type=jnp.float32)
        m_sc[...] = m_new

    # ---- finalize on the diagonal tile (last kv tile that does any work) ----
    @pl.when(kv_idx == q_idx)
    def _():
        l = l_sc[...]
        # EUP approximate reciprocal + one Newton-Raphson refinement: keeps the
        # divide off the VALU at ~f32 accuracy.
        inv = pl.reciprocal(l, approx=True)
        inv = inv * (jnp.float32(2.0) - l * inv)
        o_ref[0] = (acc_sc[...] * inv).astype(o_ref.dtype)


def masked_self_attention(x, wq, wk, wv):
    """x: (B, T, D); wq/wk/wv: (D, H) pre-transposed nn.Linear weights (no bias)."""
    B, T, D = x.shape
    H = wq.shape[1]
    out_dtype = x.dtype

    # bf16-in / f32-accumulate is the full-rate MXU path on v5e/v6e/v7x.
    cdt = jnp.bfloat16
    x_c = x.astype(cdt)
    wq_c = wq.astype(cdt)
    wk_c = wk.astype(cdt)
    wv_c = wv.astype(cdt)

    # Equal q/kv tiles so the causal tile skip reduces to (kv_idx <= q_idx).
    t_tile = T if T <= 128 else 128
    assert T % t_tile == 0, "T must be a multiple of the tile size"
    n_t = T // t_tile

    itemsize = jnp.dtype(cdt).itemsize
    n_pairs = n_t * (n_t + 1) // 2  # kv tiles actually computed per batch
    flops = B * (2 * T * D * H                              # q projection
                 + n_pairs * (4 * t_tile * D * H            # k and v projections
                              + 4 * t_tile * t_tile * H))   # q@k^T and p@v
    transcendentals = B * n_pairs * t_tile * t_tile + B * T
    bytes_accessed = (B * T * D                    # x for q tiles
                      + B * n_pairs * t_tile * D   # x for kv tiles
                      + 3 * D * H                  # weights
                      + B * T * H) * itemsize      # output

    return pl.pallas_call(
        _flash_attn_kernel,
        out_shape=jax.ShapeDtypeStruct((B, T, H), out_dtype),
        grid_spec=pltpu.PrefetchScalarGridSpec(
            num_scalar_prefetch=0,
            grid=(B, n_t, n_t),
            in_specs=[
                pl.BlockSpec((1, t_tile, D), lambda b, qi, ki: (b, qi, 0)),  # x (q rows)
                pl.BlockSpec((1, t_tile, D), lambda b, qi, ki: (b, ki, 0)),  # x (kv rows)
                pl.BlockSpec((D, H), lambda b, qi, ki: (0, 0)),              # wq
                pl.BlockSpec((D, H), lambda b, qi, ki: (0, 0)),              # wk
                pl.BlockSpec((D, H), lambda b, qi, ki: (0, 0)),              # wv
            ],
            out_specs=pl.BlockSpec((1, t_tile, H), lambda b, qi, ki: (b, qi, 0)),
            scratch_shapes=[
                pltpu.VMEM((t_tile, H), cdt),          # projected, pre-scaled q
                pltpu.VMEM((t_tile, 1), jnp.float32),  # running max m
                pltpu.VMEM((t_tile, 1), jnp.float32),  # running denominator l
                pltpu.VMEM((t_tile, H), jnp.float32),  # output accumulator
            ]),
        compiler_params=pltpu.CompilerParams(
            # batch / q tiles are independent (megacore-shardable on v7x);
            # kv is the online-softmax reduction axis -> last and "arbitrary".
            dimension_semantics=("parallel", "parallel", "arbitrary")),
        cost_estimate=pl.CostEstimate(
            flops=flops,
            transcendentals=transcendentals,
            bytes_accessed=bytes_accessed),
    )(x_c, x_c, wq_c, wk_c, wv_c)


def _reference(x, wq, wk, wv):
    """Pure-f32 reference mirroring the PyTorch module's forward."""
    q = x @ wq
    k = x @ wk
    v = x @ wv
    d_head = wq.shape[1]
    s = jnp.einsum("btd,bsd->bts", q, k) / math.sqrt(float(d_head))
    T = x.shape[1]
    causal = jnp.tril(jnp.ones((T, T), dtype=bool))
    s = jnp.where(causal[None, :, :], s, -jnp.inf)
    p = jax.nn.softmax(s, axis=-1)
    return jnp.einsum("bts,bsh->bth", p, v)


if __name__ == "__main__":
    # config: d_model=32, n_heads=4 -> d_head=8, context_length=8, p_dropout=0.0
    B, T, D, n_heads = 2, 8, 32, 4
    H = D // n_heads  # d_head = 8

    key = jax.random.PRNGKey(0)
    kx, kq, kk, kv_ = jax.random.split(key, 4)
    x = jax.random.normal(kx, (B, T, D), dtype=jnp.float32)

    # Deterministic init mimicking nn.Linear uniform(-1/sqrt(fan_in), ...),
    # stored pre-transposed as (d_model, d_head).
    bound = 1.0 / math.sqrt(D)
    wq = jax.random.uniform(kq, (D, H), jnp.float32, -bound, bound)
    wk = jax.random.uniform(kk, (D, H), jnp.float32, -bound, bound)
    wv = jax.random.uniform(kv_, (D, H), jnp.float32, -bound, bound)

    fwd = jax.jit(masked_self_attention)  # folds the wrapper-side bf16 casts
    out = jax.block_until_ready(fwd(x, wq, wk, wv))

    ref = _reference(x, wq, wk, wv)
    assert out.shape == (B, T, H)
    assert out.dtype == x.dtype
    # Tolerance reflects the bf16-in / f32-accumulate MXU path (bf16 rounding of
    # x, weights, q/k/v and p dominates; approx-reciprocal error is << that).
    err = float(jnp.max(jnp.abs(out - ref)))
    assert jnp.allclose(out, ref, atol=3e-2, rtol=3e-2), f"mismatch vs. reference, max err {err}"

    print("KERNEL_OK")
</pallas_src>

<mosaic_0001>
module attributes {stable_mosaic.version = 11 : i64} {
  func.func @_flash_attn_kernel(%arg0: i32, %arg1: i32, %arg2: i32, %arg3: memref<1x8x32xbf16, #tpu.memory_space<vmem>>, %arg4: memref<1x8x32xbf16, #tpu.memory_space<vmem>>, %arg5: memref<32x8xbf16, #tpu.memory_space<vmem>>, %arg6: memref<32x8xbf16, #tpu.memory_space<vmem>>, %arg7: memref<32x8xbf16, #tpu.memory_space<vmem>>, %arg8: memref<1x8x8xf32, #tpu.memory_space<vmem>>, %arg9: memref<8x8xbf16, #tpu.memory_space<vmem>>, %arg10: memref<8x1xf32, #tpu.memory_space<vmem>>, %arg11: memref<8x1xf32, #tpu.memory_space<vmem>>, %arg12: memref<8x8xf32, #tpu.memory_space<vmem>>) attributes {dimension_semantics = [#tpu.dimension_semantics<parallel>, #tpu.dimension_semantics<parallel>, #tpu.dimension_semantics<arbitrary>], iteration_bounds = array<i64: 2, 1, 1>, scalar_prefetch = 0 : i64, scratch_operands = 4 : i64, tpu.core_type = #tpu.core_type<tc>, window_params = [{transform_indices = @transform_0, window_bounds = array<i64: 1, 8, 32>}, {transform_indices = @transform_1, window_bounds = array<i64: 1, 8, 32>}, {pipeline_mode = #tpu.pipeline_mode<synchronous>, transform_indices = @transform_2, window_bounds = array<i64: 32, 8>}, {pipeline_mode = #tpu.pipeline_mode<synchronous>, transform_indices = @transform_3, window_bounds = array<i64: 32, 8>}, {pipeline_mode = #tpu.pipeline_mode<synchronous>, transform_indices = @transform_4, window_bounds = array<i64: 32, 8>}, {transform_indices = @transform_5, window_bounds = array<i64: 1, 8, 8>}]} {
    %c0_i32 = arith.constant 0 : i32
    %0 = arith.cmpi eq, %arg2, %c0_i32 : i32
    %1 = arith.extui %0 : i1 to i32
    %cst = arith.constant 0.353553385 : f32
    %c0_i32_0 = arith.constant 0 : i32
    %2 = arith.cmpi ne, %1, %c0_i32_0 : i32
    scf.if %2 {
      %c0 = arith.constant 0 : index
      %c0_3 = arith.constant 0 : index
      %c0_4 = arith.constant 0 : index
      %9 = vector.load %arg3[%c0, %c0_3, %c0_4] : memref<1x8x32xbf16, #tpu.memory_space<vmem>>, vector<1x8x32xbf16>
      %10 = vector.shape_cast %9 : vector<1x8x32xbf16> to vector<8x32xbf16>
      %c0_5 = arith.constant 0 : index
      %c0_6 = arith.constant 0 : index
      %11 = vector.load %arg5[%c0_5, %c0_6] : memref<32x8xbf16, #tpu.memory_space<vmem>>, vector<32x8xbf16>
      %cst_7 = arith.constant dense<0.000000e+00> : vector<8x8xf32>
      %12 = tpu.matmul %10, %11, %cst_7 {dimension_numbers = #tpu.dot_dimension_numbers<[1], [0], [0], [1], [0, 0, 1, 1], [], []>} : vector<8x32xbf16>, vector<32x8xbf16>, vector<8x8xf32> -> vector<8x8xf32>
      %13 = vector.broadcast %cst : f32 to vector<8x8xf32>
      %14 = arith.mulf %12, %13 : vector<8x8xf32>
      %15 = arith.truncf %14 : vector<8x8xf32> to vector<8x8xbf16>
      %c0_8 = arith.constant 0 : index
      %c0_9 = arith.constant 0 : index
      %16 = vector.load %arg9[%c0_8, %c0_9] : memref<8x8xbf16, #tpu.memory_space<vmem>>, vector<8x8xbf16>
      tpu.vector_store %arg9[%c0_8, %c0_9], %15 {strides = array<i32>} : memref<8x8xbf16, #tpu.memory_space<vmem>>, vector<8x8xbf16>,
      %cst_10 = arith.constant -1.000000e+30 : f32
      %17 = vector.broadcast %cst_10 : f32 to vector<8x1xf32>
      %c0_11 = arith.constant 0 : index
      %c0_12 = arith.constant 0 : index
      %18 = vector.load %arg10[%c0_11, %c0_12] : memref<8x1xf32, #tpu.memory_space<vmem>>, vector<8x1xf32>
      tpu.vector_store %arg10[%c0_11, %c0_12], %17 {strides = array<i32>} : memref<8x1xf32, #tpu.memory_space<vmem>>, vector<8x1xf32>,
      %cst_13 = arith.constant 0.000000e+00 : f32
      %19 = vector.broadcast %cst_13 : f32 to vector<8x1xf32>
      %c0_14 = arith.constant 0 : index
      %c0_15 = arith.constant 0 : index
      %20 = vector.load %arg11[%c0_14, %c0_15] : memref<8x1xf32, #tpu.memory_space<vmem>>, vector<8x1xf32>
      tpu.vector_store %arg11[%c0_14, %c0_15], %19 {strides = array<i32>} : memref<8x1xf32, #tpu.memory_space<vmem>>, vector<8x1xf32>,
      %cst_16 = arith.constant 0.000000e+00 : f32
      %21 = vector.broadcast %cst_16 : f32 to vector<8x8xf32>
      %c0_17 = arith.constant 0 : index
      %c0_18 = arith.constant 0 : index
      %22 = vector.load %arg12[%c0_17, %c0_18] : memref<8x8xf32, #tpu.memory_space<vmem>>, vector<8x8xf32>
      tpu.vector_store %arg12[%c0_17, %c0_18], %21 {strides = array<i32>} : memref<8x8xf32, #tpu.memory_space<vmem>>, vector<8x8xf32>,
    } else {
    }
    %3 = arith.cmpi sle, %arg2, %arg1 : i32
    %4 = arith.extui %3 : i1 to i32
    %c0_i32_1 = arith.constant 0 : i32
    %5 = arith.cmpi ne, %4, %c0_i32_1 : i32
    scf.if %5 {
      %c0 = arith.constant 0 : index
      %c0_3 = arith.constant 0 : index
      %c0_4 = arith.constant 0 : index
      %9 = vector.load %arg4[%c0, %c0_3, %c0_4] : memref<1x8x32xbf16, #tpu.memory_space<vmem>>, vector<1x8x32xbf16>
      %10 = vector.shape_cast %9 : vector<1x8x32xbf16> to vector<8x32xbf16>
      %c0_5 = arith.constant 0 : index
      %c0_6 = arith.constant 0 : index
      %11 = vector.load %arg6[%c0_5, %c0_6] : memref<32x8xbf16, #tpu.memory_space<vmem>>, vector<32x8xbf16>
      %cst_7 = arith.constant dense<0.000000e+00> : vector<8x8xf32>
      %12 = tpu.matmul %10, %11, %cst_7 {dimension_numbers = #tpu.dot_dimension_numbers<[1], [0], [0], [1], [0, 0, 1, 1], [], []>} : vector<8x32xbf16>, vector<32x8xbf16>, vector<8x8xf32> -> vector<8x8xf32>
      %13 = arith.truncf %12 : vector<8x8xf32> to vector<8x8xbf16>
      %c0_8 = arith.constant 0 : index
      %c0_9 = arith.constant 0 : index
      %14 = vector.load %arg7[%c0_8, %c0_9] : memref<32x8xbf16, #tpu.memory_space<vmem>>, vector<32x8xbf16>
      %cst_10 = arith.constant dense<0.000000e+00> : vector<8x8xf32>
      %15 = tpu.matmul %10, %14, %cst_10 {dimension_numbers = #tpu.dot_dimension_numbers<[1], [0], [0], [1], [0, 0, 1, 1], [], []>} : vector<8x32xbf16>, vector<32x8xbf16>, vector<8x8xf32> -> vector<8x8xf32>
      %16 = arith.truncf %15 : vector<8x8xf32> to vector<8x8xbf16>
      %c0_11 = arith.constant 0 : index
      %c0_12 = arith.constant 0 : index
      %17 = vector.load %arg9[%c0_11, %c0_12] : memref<8x8xbf16, #tpu.memory_space<vmem>>, vector<8x8xbf16>
      %cst_13 = arith.constant dense<0.000000e+00> : vector<8x8xf32>
      %18 = tpu.matmul %17, %13, %cst_13 {dimension_numbers = #tpu.dot_dimension_numbers<[1], [1], [0], [0], [0, 0, 1, 0], [], []>} : vector<8x8xbf16>, vector<8x8xbf16>, vector<8x8xf32> -> vector<8x8xf32>
      %c8_i32 = arith.constant 8 : i32
      %19 = arith.muli %arg1, %c8_i32 : i32
      %20 = tpu.iota {dimensions = array<i32: 0>} : vector<8x8xi32>
      %21 = vector.broadcast %19 : i32 to vector<8x8xi32>
      %22 = arith.addi %21, %20 : vector<8x8xi32>
      %c8_i32_14 = arith.constant 8 : i32
      %23 = arith.muli %arg2, %c8_i32_14 : i32
      %24 = tpu.iota {dimensions = array<i32: 1>} : vector<8x8xi32>
      %25 = vector.broadcast %23 : i32 to vector<8x8xi32>
      %26 = arith.addi %25, %24 : vector<8x8xi32>
      %27 = arith.cmpi slt, %arg2, %arg1 : i32
      %28 = arith.cmpi sle, %26, %22 : vector<8x8xi32>
      %29 = vector.broadcast %27 : i1 to vector<8x8xi1>
      %30 = arith.ori %29, %28 : vector<8x8xi1>
      %cst_15 = arith.constant -1.000000e+30 : f32
      %31 = vector.broadcast %cst_15 : f32 to vector<8x8xf32>
      %32 = arith.select %30, %18, %31 : vector<8x8xi1>, vector<8x8xf32>
      %c0_16 = arith.constant 0 : index
      %c0_17 = arith.constant 0 : index
      %33 = vector.load %arg10[%c0_16, %c0_17] : memref<8x1xf32, #tpu.memory_space<vmem>>, vector<8x1xf32>
      %cst_18 = arith.constant dense<0xFF800000> : vector<8xf32>
      %34 = vector.multi_reduction <maximumf>, %32, %cst_18 [1] : vector<8x8xf32> to vector<8xf32>
      %35 = vector.shape_cast %34 : vector<8xf32> to vector<8x1xf32>
      %36 = arith.maximumf %33, %35 : vector<8x1xf32>
      %37 = arith.subf %33, %36 : vector<8x1xf32>
      %38 = math.exp %37 : vector<8x1xf32>
      %39 = vector.broadcast %36 : vector<8x1xf32> to vector<8x8xf32>
      %40 = arith.subf %32, %39 : vector<8x8xf32>
      %41 = math.exp %40 : vector<8x8xf32>
      %c0_19 = arith.constant 0 : index
      %c0_20 = arith.constant 0 : index
      %42 = vector.load %arg11[%c0_19, %c0_20] : memref<8x1xf32, #tpu.memory_space<vmem>>, vector<8x1xf32>
      %43 = arith.mulf %38, %42 : vector<8x1xf32>
      %cst_21 = arith.constant dense<0.000000e+00> : vector<8xf32>
      %44 = vector.multi_reduction <add>, %41, %cst_21 [1] : vector<8x8xf32> to vector<8xf32>
      %45 = vector.shape_cast %44 : vector<8xf32> to vector<8x1xf32>
      %46 = arith.addf %43, %45 : vector<8x1xf32>
      %c0_22 = arith.constant 0 : index
      %c0_23 = arith.constant 0 : index
      %47 = vector.load %arg11[%c0_22, %c0_23] : memref<8x1xf32, #tpu.memory_space<vmem>>, vector<8x1xf32>
      tpu.vector_store %arg11[%c0_22, %c0_23], %46 {strides = array<i32>} : memref<8x1xf32, #tpu.memory_space<vmem>>, vector<8x1xf32>,
      %c0_24 = arith.constant 0 : index
      %c0_25 = arith.constant 0 : index
      %48 = vector.load %arg12[%c0_24, %c0_25] : memref<8x8xf32, #tpu.memory_space<vmem>>, vector<8x8xf32>
      %49 = vector.broadcast %38 : vector<8x1xf32> to vector<8x8xf32>
      %50 = arith.mulf %49, %48 : vector<8x8xf32>
      %51 = arith.truncf %41 : vector<8x8xf32> to vector<8x8xbf16>
      %cst_26 = arith.constant dense<0.000000e+00> : vector<8x8xf32>
      %52 = tpu.matmul %51, %16, %cst_26 {dimension_numbers = #tpu.dot_dimension_numbers<[1], [0], [0], [1], [0, 0, 1, 1], [], []>} : vector<8x8xbf16>, vector<8x8xbf16>, vector<8x8xf32> -> vector<8x8xf32>
      %53 = arith.addf %50, %52 : vector<8x8xf32>
      %c0_27 = arith.constant 0 : index
      %c0_28 = arith.constant 0 : index
      %54 = vector.load %arg12[%c0_27, %c0_28] : memref<8x8xf32, #tpu.memory_space<vmem>>, vector<8x8xf32>
      tpu.vector_store %arg12[%c0_27, %c0_28], %53 {strides = array<i32>} : memref<8x8xf32, #tpu.memory_space<vmem>>, vector<8x8xf32>,
      %c0_29 = arith.constant 0 : index
      %c0_30 = arith.constant 0 : index
      %55 = vector.load %arg10[%c0_29, %c0_30] : memref<8x1xf32, #tpu.memory_space<vmem>>, vector<8x1xf32>
      tpu.vector_store %arg10[%c0_29, %c0_30], %36 {strides = array<i32>} : memref<8x1xf32, #tpu.memory_space<vmem>>, vector<8x1xf32>,
    } else {
    }
    %6 = arith.cmpi eq, %arg2, %arg1 : i32
    %7 = arith.extui %6 : i1 to i32
    %c0_i32_2 = arith.constant 0 : i32
    %8 = arith.cmpi ne, %7, %c0_i32_2 : i32
    scf.if %8 {
      %c0 = arith.constant 0 : index
      %c0_3 = arith.constant 0 : index
      %9 = vector.load %arg11[%c0, %c0_3] : memref<8x1xf32, #tpu.memory_space<vmem>>, vector<8x1xf32>
      %10 = tpu.reciprocal %9 {approx = true} : vector<8x1xf32> -> vector<8x1xf32>
      %11 = arith.mulf %9, %10 : vector<8x1xf32>
      %cst_4 = arith.constant 2.000000e+00 : f32
      %12 = vector.broadcast %cst_4 : f32 to vector<8x1xf32>
      %13 = arith.subf %12, %11 : vector<8x1xf32>
      %14 = arith.mulf %10, %13 : vector<8x1xf32>
      %c0_5 = arith.constant 0 : index
      %c0_6 = arith.constant 0 : index
      %15 = vector.load %arg12[%c0_5, %c0_6] : memref<8x8xf32, #tpu.memory_space<vmem>>, vector<8x8xf32>
      %16 = vector.broadcast %14 : vector<8x1xf32> to vector<8x8xf32>
      %17 = arith.mulf %15, %16 : vector<8x8xf32>
      %c0_7 = arith.constant 0 : index
      %c0_8 = arith.constant 0 : index
      %c0_9 = arith.constant 0 : index
      %18 = vector.load %arg8[%c0_7, %c0_8, %c0_9] : memref<1x8x8xf32, #tpu.memory_space<vmem>>, vector<1x8x8xf32>
      %19 = vector.shape_cast %18 : vector<1x8x8xf32> to vector<8x8xf32>
      %20 = vector.shape_cast %17 : vector<8x8xf32> to vector<1x8x8xf32>
      tpu.vector_store %arg8[%c0_7, %c0_8, %c0_9], %20 {strides = array<i32>} : memref<1x8x8xf32, #tpu.memory_space<vmem>>, vector<1x8x8xf32>,
    } else {
    }
    return
  }
  func.func @transform_0(%arg0: i32, %arg1: i32, %arg2: i32) -> (i32, i32, i32) {
    %c0_i32 = arith.constant 0 : i32
    %c0_i32_0 = arith.constant 0 : i32
    return %arg0, %arg1, %c0_i32 : i32, i32, i32
  }
  func.func @transform_1(%arg0: i32, %arg1: i32, %arg2: i32) -> (i32, i32, i32) {
    %c0_i32 = arith.constant 0 : i32
    %c0_i32_0 = arith.constant 0 : i32
    return %arg0, %arg2, %c0_i32 : i32, i32, i32
  }
  func.func @transform_2(%arg0: i32, %arg1: i32, %arg2: i32) -> (i32, i32) {
    %c0_i32 = arith.constant 0 : i32
    %c0_i32_0 = arith.constant 0 : i32
    %c0_i32_1 = arith.constant 0 : i32
    return %c0_i32, %c0_i32_0 : i32, i32
  }
  func.func @transform_3(%arg0: i32, %arg1: i32, %arg2: i32) -> (i32, i32) {
    %c0_i32 = arith.constant 0 : i32
    %c0_i32_0 = arith.constant 0 : i32
    %c0_i32_1 = arith.constant 0 : i32
    return %c0_i32, %c0_i32_0 : i32, i32
  }
  func.func @transform_4(%arg0: i32, %arg1: i32, %arg2: i32) -> (i32, i32) {
    %c0_i32 = arith.constant 0 : i32
    %c0_i32_0 = arith.constant 0 : i32
    %c0_i32_1 = arith.constant 0 : i32
    return %c0_i32, %c0_i32_0 : i32, i32
  }
  func.func @transform_5(%arg0: i32, %arg1: i32, %arg2: i32) -> (i32, i32, i32) {
    %c0_i32 = arith.constant 0 : i32
    %c0_i32_0 = arith.constant 0 : i32
    return %arg0, %arg1, %c0_i32 : i32, i32, i32
  }
}

</mosaic_0001>

<llo_original>
// kernel: masked_self_attention.1
$region0: #{masked_self_attention.1}
  #allocation0 [shape = 'u32[]', space=smem, size = 0x4, offset = 0x4, fixed_abs, tag = 'smem constant byte address 0x4 - core index']
  #allocation1 [shape = 'u32[72,128]{1,0:T(1,128)}', space=vmem, size = 0x9000, scoped, tag = 'internal scratch']
  #allocation2 [shape = 'bf16[8,8]{1,0:T(8,128)(2,1)}', space=vmem, size = 0x800, scoped, tag = 'scratch operand']
  #allocation3 [shape = 'f32[8,1]{1,0:T(8,128)}', space=vmem, size = 0x1000, scoped, tag = 'scratch operand']
  #allocation4 [shape = 'f32[8,1]{1,0:T(8,128)}', space=vmem, size = 0x1000, scoped, tag = 'scratch operand']
  #allocation5 [shape = 'f32[8,8]{1,0:T(8,128)}', space=vmem, size = 0x1000, scoped, tag = 'scratch operand']
  %s0 = inlined_call_operand.vmem [shape: bf16[2,8,32], index: 0, kind: input, shape index: {}, may-alias: {0,1}]
  %s1 = inlined_call_operand.vmem [shape: bf16[2,8,32], index: 1, kind: input, shape index: {}, may-alias: {0,1}]
  %s2 = inlined_call_operand.vmem [shape: bf16[32,8], index: 2, kind: input, shape index: {}]
  %s3 = inlined_call_operand.vmem [shape: bf16[32,8], index: 3, kind: input, shape index: {}]
  %s4 = inlined_call_operand.vmem [shape: bf16[32,8], index: 4, kind: input, shape index: {}]
  %s5 = inlined_call_operand.hbm [shape: f32[2,8,8], index: 5, kind: output, shape index: {}]
  %s6 = sld [smem:[#allocation0]]
  $region65: #{masked_self_attention.1} parent=0
    _
  %s8 = ssub.s32 1, %s6
  %s9 = scalar_select 0, %s8, %s6
  $region1: #{masked_self_attention.1} parent=0
    #allocation6 [shape = 'u8[8192]{0}', space=vmem, size = 0x2000, scoped, tag = 'output window, operand 0']
    #allocation7 [shape = 's32[2]{0}', space=sflag, size = 0x8, scoped, tag = 'scoped memory for masked_self_attention.1']
    %10 = vsyncpa [#allocation7], 0
    %s11 = scalar_lea.sflag [#allocation7], 1
    %12 = vsyncpa %s11, 0
    loop: start=0, step=1, limit=4
    $region2: #{masked_self_attention.1} parent=1 // loop_pre_header
      _
    $region3: #{masked_self_attention.1} parent=1 // loop_header
      %s14 = sphi 0, %s18
      %p15 = scmp.ge.s32.totalorder %s14, 4
      %s21 = sphi 0, %s40
      %s22 = sphi 0, %s36
      %s23 = sphi 0, %s32
      %s24 = sphi 0, %s21
      %s25 = sphi 0, %s22
      %s26 = sphi 0, %s23
      %s27 = sphi 0, %s24
      %s28 = sphi 0, %s25
      %s29 = sphi 0, %s26
      %s45 = sphi 0, %s47
      %s48 = sphi 0, %s45
      %s49 = sphi 0, %s48
      %s65 = sphi 0, %s49
      %s73 = sphi 0, %s75
      %s76 = sphi 0, %s73
      %s77 = sphi 0, %s76
      %s93 = sphi 0, %s77
      %s97 = sphi 0, %s97
      %s99 = sphi 0, %s97
      %s100 = sphi 0, %s99
      %s114 = sphi 0, %s100
      %s118 = sphi 0, %s118
      %s120 = sphi 0, %s118
      %s121 = sphi 0, %s120
      %s135 = sphi 0, %s121
      %s139 = sphi 0, %s139
      %s141 = sphi 0, %s139
      %s142 = sphi 0, %s141
      %s156 = sphi 0, %s142
      %s164 = sphi 0, %s166
      %s167 = sphi 0, %s164
      %s168 = sphi 0, %s167
      %s184 = sphi 0, %s168
    $region4: #{masked_self_attention.1} parent=1 // loop_header_branch
      %17 = sbr.rel (%p15) target = $region8
    $region5: #{masked_self_attention.1} parent=1 // loop_body
      %s19 = ssub.s32 %s14, 1
      %s20 = ssub.s32 %s14, 2
      %s30 = sadd.s32 1, %s23
      %p31 = scmp.ge.s32.totalorder %s30, 1
      %s32 = scalar_select %p31, 0, %s30
      %s33 = sadd.s32 1, %s22
      %s34 = scalar_select %p31, %s33, %s22
      %p35 = scmp.ge.s32.totalorder %s34, 1
      %s36 = scalar_select %p35, 0, %s34
      %s37 = sadd.s32 1, %s21
      %s38 = scalar_select %p35, %s37, %s21
      %p39 = scmp.ge.s32.totalorder %s38, 2
      %s40 = scalar_select %p39, 0, %s38
      %s41 = ssub.s32 %s21, %s40
      %s42 = ssub.s32 %s22, %s36
      %s43 = sor.u32 %s41, %s42
      %p44 = scmp.eq.s32.totalorder %s43, 0
      %s46 = sadd.s32 %s45, 1
      %s47 = scalar_select %p44, %s45, %s46
      %p50 = pneg %p44
      %p51 = scmp.eq.s32.totalorder %s14, 1
      %p52 = por %p50, %p51
      %p53 = scmp.ne.s32.totalorder %s45, %s48
      %p54 = scmp.eq.s32.totalorder %s14, 0
      %p55 = por %p53, %p54
      %p56 = scmp.ne.s32.totalorder %s45, %s48
      %p57 = scmp.eq.s32.totalorder %s19, 1
      %p58 = por %p56, %p57
      %p59 = scmp.ne.s32.totalorder %s48, %s49
      %p60 = scmp.eq.s32.totalorder %s19, 0
      %p61 = por %p59, %p60
      %p62 = scmp.ne.s32.totalorder %s48, %s49
      %p63 = scmp.eq.s32.totalorder %s20, 1
      %p64 = por %p62, %p63
      %p66 = scmp.ne.s32.totalorder %s49, %s65
      %p67 = scmp.eq.s32.totalorder %s20, 0
      %p68 = por %p66, %p67
      %s69 = ssub.s32 %s21, %s40
      %s70 = ssub.s32 %s23, %s32
      %s71 = sor.u32 %s69, %s70
      %p72 = scmp.eq.s32.totalorder %s71, 0
      %s74 = sadd.s32 %s73, 1
      %s75 = scalar_select %p72, %s73, %s74
      %p78 = pneg %p72
      %p79 = scmp.eq.s32.totalorder %s14, 1
      %p80 = por %p78, %p79
      %p81 = scmp.ne.s32.totalorder %s73, %s76
      %p82 = scmp.eq.s32.totalorder %s14, 0
      %p83 = por %p81, %p82
      %p84 = scmp.ne.s32.totalorder %s73, %s76
      %p85 = scmp.eq.s32.totalorder %s19, 1
      %p86 = por %p84, %p85
      %p87 = scmp.ne.s32.totalorder %s76, %s77
      %p88 = scmp.eq.s32.totalorder %s19, 0
      %p89 = por %p87, %p88
      %p90 = scmp.ne.s32.totalorder %s76, %s77
      %p91 = scmp.eq.s32.totalorder %s20, 1
      %p92 = por %p90, %p91
      %p94 = scmp.ne.s32.totalorder %s77, %s93
      %p95 = scmp.eq.s32.totalorder %s20, 0
      %p96 = por %p94, %p95
      %s98 = sadd.s32 %s97, 1
      %p101 = scmp.eq.s32.totalorder %s14, 1
      %p102 = scmp.ne.s32.totalorder %s97, %s99
      %p103 = scmp.eq.s32.totalorder %s14, 0
      %p104 = por %p102, %p103
      %p105 = scmp.ne.s32.totalorder %s97, %s99
      %p106 = scmp.eq.s32.totalorder %s19, 1
      %p107 = por %p105, %p106
      %p108 = scmp.ne.s32.totalorder %s99, %s100
      %p109 = scmp.eq.s32.totalorder %s19, 0
      %p110 = por %p108, %p109
      %p111 = scmp.ne.s32.totalorder %s99, %s100
      %p112 = scmp.eq.s32.totalorder %s20, 1
      %p113 = por %p111, %p112
      %p115 = scmp.ne.s32.totalorder %s100, %s114
      %p116 = scmp.eq.s32.totalorder %s20, 0
      %p117 = por %p115, %p116
      %s119 = sadd.s32 %s118, 1
      %p122 = scmp.eq.s32.totalorder %s14, 1
      %p123 = scmp.ne.s32.totalorder %s118, %s120
      %p124 = scmp.eq.s32.totalorder %s14, 0
      %p125 = por %p123, %p124
      %p126 = scmp.ne.s32.totalorder %s118, %s120
      %p127 = scmp.eq.s32.totalorder %s19, 1
      %p128 = por %p126, %p127
      %p129 = scmp.ne.s32.totalorder %s120, %s121
      %p130 = scmp.eq.s32.totalorder %s19, 0
      %p131 = por %p129, %p130
      %p132 = scmp.ne.s32.totalorder %s120, %s121
      %p133 = scmp.eq.s32.totalorder %s20, 1
      %p134 = por %p132, %p133
      %p136 = scmp.ne.s32.totalorder %s121, %s135
      %p137 = scmp.eq.s32.totalorder %s20, 0
      %p138 = por %p136, %p137
      %s140 = sadd.s32 %s139, 1
      %p143 = scmp.eq.s32.totalorder %s14, 1
      %p144 = scmp.ne.s32.totalorder %s139, %s141
      %p145 = scmp.eq.s32.totalorder %s14, 0
      %p146 = por %p144, %p145
      %p147 = scmp.ne.s32.totalorder %s139, %s141
      %p148 = scmp.eq.s32.totalorder %s19, 1
      %p149 = por %p147, %p148
      %p150 = scmp.ne.s32.totalorder %s141, %s142
      %p151 = scmp.eq.s32.totalorder %s19, 0
      %p152 = por %p150, %p151
      %p153 = scmp.ne.s32.totalorder %s141, %s142
      %p154 = scmp.eq.s32.totalorder %s20, 1
      %p155 = por %p153, %p154
      %p157 = scmp.ne.s32.totalorder %s142, %s156
      %p158 = scmp.eq.s32.totalorder %s20, 0
      %p159 = por %p157, %p158
      %s160 = ssub.s32 %s21, %s40
      %s161 = ssub.s32 %s22, %s36
      %s162 = sor.u32 %s160, %s161
      %p163 = scmp.eq.s32.totalorder %s162, 0
      %s165 = sadd.s32 %s164, 1
      %s166 = scalar_select %p163, %s164, %s165
      %p169 = pneg %p163
      %p170 = scmp.eq.s32.totalorder %s14, 1
      %p171 = por %p169, %p170
      %p172 = scmp.ne.s32.totalorder %s164, %s167
      %p173 = scmp.eq.s32.totalorder %s14, 0
      %p174 = por %p172, %p173
      %p175 = scmp.ne.s32.totalorder %s164, %s167
      %p176 = scmp.eq.s32.totalorder %s19, 1
      %p177 = por %p175, %p176
      %p178 = scmp.ne.s32.totalorder %s167, %s168
      %p179 = scmp.eq.s32.totalorder %s19, 0
      %p180 = por %p178, %p179
      %p181 = scmp.ne.s32.totalorder %s167, %s168
      %p182 = scmp.eq.s32.totalorder %s20, 1
      %p183 = por %p181, %p182
      %p185 = scmp.ne.s32.totalorder %s168, %s184
      %p186 = scmp.eq.s32.totalorder %s20, 0
      %p187 = por %p185, %p186
      %p188 = scmp.le.s32.totalorder 1, %s14
      %p189 = scmp.lt.s32.totalorder %s14, 3
      %p190 = pnand %p188, %p189
      %p191 = pneg %p190
      // Predicated region
      $region9: #{masked_self_attention.1} parent=5 // pred_check
        _
      $region10: #{masked_self_attention.1} parent=5 // pred_check_branch
        %193 = sbr.rel (%p190) target = $region12
      $region11: #{masked_self_attention.1} parent=5 // pred_region
        %s194 = ssub.s32 %s14, 1
        // Predicated region
        $region13: #{masked_self_attention.1} parent=11 // pred_check
          %p195 = pneg %p110
        $region14: #{masked_self_attention.1} parent=11 // pred_check_branch
          %197 = sbr.rel (%p195) target = $region16
        $region15: #{masked_self_attention.1} parent=11 // pred_region
          _
        $region16: #{masked_self_attention.1} parent=11 // pred_fallthru
          _
        // Predicated region
        $region17: #{masked_self_attention.1} parent=11 // pred_check
          %p198 = pneg %p131
        $region18: #{masked_self_attention.1} parent=11 // pred_check_branch
          %200 = sbr.rel (%p198) target = $region20
        $region19: #{masked_self_attention.1} parent=11 // pred_region
          _
        $region20: #{masked_self_attention.1} parent=11 // pred_fallthru
          _
        // Predicated region
        $region21: #{masked_self_attention.1} parent=11 // pred_check
          %p201 = pneg %p152
        $region22: #{masked_self_attention.1} parent=11 // pred_check_branch
          %203 = sbr.rel (%p201) target = $region24
        $region23: #{masked_self_attention.1} parent=11 // pred_region
          _
        $region24: #{masked_self_attention.1} parent=11 // pred_fallthru
          _
      $region12: #{masked_self_attention.1} parent=5 // pred_fallthru
        _
      %p204 = scmp.lt.s32.totalorder %s14, 2
      // Predicated region
      $region25: #{masked_self_attention.1} parent=5 // pred_check
        %p205 = pneg %p204
      $region26: #{masked_self_attention.1} parent=5 // pred_check_branch
        %207 = sbr.rel (%p205) target = $region28
      $region27: #{masked_self_attention.1} parent=5 // pred_region
        // Predicated region
        $region29: #{masked_self_attention.1} parent=27 // pred_check
          %p208 = pneg %p55
        $region30: #{masked_self_attention.1} parent=27 // pred_check_branch
          %210 = sbr.rel (%p208) target = $region32
        $region31: #{masked_self_attention.1} parent=27 // pred_region
          %p211 = scmp.lt.s32.totalorder %s21, 1
          %s212 = scalar_select %p211, %s21, 1
          %p213 = scmp.lt.s32.totalorder %s22, 0
          %s214 = scalar_select %p213, %s22, 0
          %s215 = sadd.s32 %s214, %s212
          %s216 = smul.addr %s215, 4
          %s217 = scalar_lea.vmem %s0, %s216
        $region32: #{masked_self_attention.1} parent=27 // pred_fallthru
          _
        // Predicated region
        $region33: #{masked_self_attention.1} parent=27 // pred_check
          %p218 = pneg %p83
        $region34: #{masked_self_attention.1} parent=27 // pred_check_branch
          %220 = sbr.rel (%p218) target = $region36
        $region35: #{masked_self_attention.1} parent=27 // pred_region
          %p221 = scmp.lt.s32.totalorder %s21, 1
          %s222 = scalar_select %p221, %s21, 1
          %p223 = scmp.lt.s32.totalorder %s23, 0
          %s224 = scalar_select %p223, %s23, 0
          %s225 = sadd.s32 %s224, %s222
          %s226 = smul.addr %s225, 4
          %s227 = scalar_lea.vmem %s1, %s226
        $region36: #{masked_self_attention.1} parent=27 // pred_fallthru
          _
      $region28: #{masked_self_attention.1} parent=5 // pred_fallthru
        _
      %p228 = scmp.le.s32.totalorder 1, %s14
      %p229 = scmp.lt.s32.totalorder %s14, 3
      %p230 = pnand %p228, %p229
      %p231 = pneg %p230
      // Predicated region
      $region37: #{masked_self_attention.1} parent=5 // pred_check
        _
      $region38: #{masked_self_attention.1} parent=5 // pred_check_branch
        %233 = sbr.rel (%p230) target = $region40
      $region39: #{masked_self_attention.1} parent=5 // pred_region
        %s234 = ssub.s32 %s14, 1
        %p235 = scmp.lt.s32.totalorder %s24, 1
        %s236 = scalar_select %p235, %s24, 1
        %p237 = scmp.lt.s32.totalorder %s25, 0
        %s238 = scalar_select %p237, %s25, 0
        %s239 = sadd.s32 %s238, %s236
        %s240 = smul.addr %s239, 4
        %s241 = scalar_lea.vmem %s0, %s240
        %p242 = pneg %p61
        %p243 = pneg %p58
        %p244 = scmp.lt.s32.totalorder %s24, 1
        %s245 = scalar_select %p244, %s24, 1
        %p246 = scmp.lt.s32.totalorder %s26, 0
        %s247 = scalar_select %p246, %s26, 0
        %s248 = sadd.s32 %s247, %s245
        %s249 = smul.addr %s248, 4
        %s250 = scalar_lea.vmem %s1, %s249
        %p251 = pneg %p89
        %p252 = pneg %p86
        %p253 = pneg %p110
        %p254 = pneg %p107
        %p255 = pneg %p131
        %p256 = pneg %p128
        %p257 = pneg %p152
        %p258 = pneg %p149
        %p259 = pneg %p180
        %p260 = pneg %p177
        %s261 = sand.u32 %s167, 1
        %s262 = scalar_lea.sflag [#allocation7], %s261
        %s263 = sand.u32 %s167, 1
        %s264 = smul.addr %s263, 8
        %s265 = scalar_lea.vmem [#allocation6], %s264
        %p266 = scmp.lt.s32.totalorder %s24, 1
        %s267 = scalar_select %p266, %s24, 1
        %p268 = scmp.lt.s32.totalorder %s25, 0
        %s269 = scalar_select %p268, %s25, 0
        %s270 = sadd.s32 %s269, %s267
        %s271 = smul.addr %s270, 4
        %s272 = scalar_lea.vmem %s0, %s271
        %p273 = scmp.lt.s32.totalorder %s24, 1
        %s274 = scalar_select %p273, %s24, 1
        %p275 = scmp.lt.s32.totalorder %s26, 0
        %s276 = scalar_select %p275, %s26, 0
        %s277 = sadd.s32 %s276, %s274
        %s278 = smul.addr %s277, 4
        %s279 = scalar_lea.vmem %s1, %s278
        %p281 = scmp.eq.s32.totalorder %s26, 0
        // Predicated region
        $region41: #{masked_self_attention.1} parent=39 // pred_check
          %p282 = pneg %p281
        $region42: #{masked_self_attention.1} parent=39 // pred_check_branch
          %284 = sbr.rel (%p282) target = $region44
        $region43: #{masked_self_attention.1} parent=39 // pred_region
          %v285 = vld [vmem:[%s272] sm:$0xf]
          %v286 = vld [vmem:[%s2] sm:$0xf]
          %v287 = vld [vmem:[%s2 + $0x4] sm:$0xf]
          %v288 = vld [vmem:[%s2 + $0x8] sm:$0xf]
          %v289 = vld [vmem:[%s2 + $0xc] sm:$0xf]
          %v294 = vunpack.c.l.b16 %v286
          %v295 = vunpack.c.l.b16 %v287
          %v296 = vunpack.c.l.b16 %v288
          %v297 = vunpack.c.l.b16 %v289
          %v298 = vpack.c.b16 %v295, %v294
          %v299 = vpack.c.b16 %v297, %v296
          %vm302 = vcmask 261120
          %v304 = vsel %vm302, %v285, 0
          %306 = vmatpush.bf16.msra.mxu0 0
          %307 = vmatpush.bf16.msra.mxu0 0
          %308 = vmatpush.bf16.msra.mxu0 0
          %309 = vmatpush.bf16.msra.mxu0 0
          %310 = vmatpush.bf16.msra.mxu0 0
          %311 = vmatpush.bf16.msra.mxu0 0
          %312 = vmatpush.bf16.msra.mxu0 %v299
          %313 = vmatpush.bf16.msra.mxu0 %v298
          %314 = vmatmul.bf16.gmra.mxu0 %v304
          %v315 = vpop.f32.mrf.mxu0
          %v316 = vadd.f32 0.0, %v315
          %v317 = vpop.f32.mrf.mxu0
          %318 = vdwg.mxu0
          %v319 = vmul.f32 %v316, 0.35355338
          %v320 = vpack.c.bf16 %v319, %v319
          %vm321 = vcmask 60416
          %322 = vst.msk [vmem:[#allocation2] sm:$0xf] %vm321, %v320
          %vm323 = vcmask 7168
          %324 = vst.msk [vmem:[#allocation3] sm:$0xff] %vm323, -1e+30
          %325 = vst.msk [vmem:[#allocation4] sm:$0xff] %vm323, 0.0
          %vm326 = vcmask 64512
          %327 = vst.msk [vmem:[#allocation5] sm:$0xff] %vm326, 0.0
        $region44: #{masked_self_attention.1} parent=39 // pred_fallthru
          _
        %p328 = scmp.le.s32.totalorder %s26, %s25
        // Predicated region
        $region45: #{masked_self_attention.1} parent=39 // pred_check
          %p329 = pneg %p328
        $region46: #{masked_self_attention.1} parent=39 // pred_check_branch
          %331 = sbr.rel (%p329) target = $region48
        $region47: #{masked_self_attention.1} parent=39 // pred_region
          %v332 = vld [vmem:[%s279] sm:$0xf]
          %v333 = vld [vmem:[%s3] sm:$0xf]
          %v334 = vld [vmem:[%s3 + $0x4] sm:$0xf]
          %v335 = vld [vmem:[%s3 + $0x8] sm:$0xf]
          %v336 = vld [vmem:[%s3 + $0xc] sm:$0xf]
          %v341 = vunpack.c.l.b16 %v333
          %v342 = vunpack.c.l.b16 %v334
          %v343 = vunpack.c.l.b16 %v335
          %v344 = vunpack.c.l.b16 %v336
          %v345 = vpack.c.b16 %v342, %v341
          %v346 = vpack.c.b16 %v344, %v343
          %vm349 = vcmask 261120
          %v351 = vsel %vm349, %v332, 0
          %353 = vmatpush.bf16.msra.mxu0 0
          %354 = vmatpush.bf16.msra.mxu0 0
          %355 = vmatpush.bf16.msra.mxu0 0
          %356 = vmatpush.bf16.msra.mxu0 0
          %357 = vmatpush.bf16.msra.mxu0 0
          %358 = vmatpush.bf16.msra.mxu0 0
          %359 = vmatpush.bf16.msra.mxu0 %v346
          %360 = vmatpush.bf16.msra.mxu0 %v345
          %361 = vmatmul.bf16.gmra.mxu0 %v351
          %v362 = vpop.f32.mrf.mxu0
          %v363 = vadd.f32 0.0, %v362
          %v364 = vpop.f32.mrf.mxu0
          %365 = vdwg.mxu0
          %v366 = vpack.c.bf16 %v363, %v363
          %v367 = vld [vmem:[%s4] sm:$0xf]
          %v368 = vld [vmem:[%s4 + $0x4] sm:$0xf]
          %v369 = vld [vmem:[%s4 + $0x8] sm:$0xf]
          %v370 = vld [vmem:[%s4 + $0xc] sm:$0xf]
          %v375 = vunpack.c.l.b16 %v367
          %v376 = vunpack.c.l.b16 %v368
          %v377 = vunpack.c.l.b16 %v369
          %v378 = vunpack.c.l.b16 %v370
          %v379 = vpack.c.b16 %v376, %v375
          %v380 = vpack.c.b16 %v378, %v377
          %383 = vmatpush.bf16.msra.mxu0 0
          %384 = vmatpush.bf16.msra.mxu0 0
          %385 = vmatpush.bf16.msra.mxu0 0
          %386 = vmatpush.bf16.msra.mxu0 0
          %387 = vmatpush.bf16.msra.mxu0 0
          %388 = vmatpush.bf16.msra.mxu0 0
          %389 = vmatpush.bf16.msra.mxu0 %v380
          %390 = vmatpush.bf16.msra.mxu0 %v379
          %391 = vmatmul.bf16.gmra.mxu0 %v351
          %v392 = vpop.f32.mrf.mxu0
          %v393 = vadd.f32 0.0, %v392
          %v394 = vpop.f32.mrf.mxu0
          %395 = vdwg.mxu0
          %v396 = vpack.c.bf16 %v393, %v393
          %v397 = vld [vmem:[#allocation2] sm:$0xf]
          %vm398 = vcmask 64512
          %v400 = vsel %vm398, %v397, 0
          %v403 = vsel %vm398, %v366, 0
          %405 = vmatpush.bf16.xpose.msra.mxu0 0
          %406 = vmatpush.bf16.xpose.msra.mxu0 0
          %407 = vmatpush.bf16.xpose.msra.mxu0 0
          %408 = vmatpush.bf16.xpose.msra.mxu0 0
          %409 = vmatpush.bf16.xpose.msra.mxu0 0
          %410 = vmatpush.bf16.xpose.msra.mxu0 0
          %411 = vmatpush.bf16.xpose.msra.mxu0 0
          %412 = vmatpush.bf16.xpose.msra.mxu0 %v403
          %413 = vmatmul.bf16.gmra.mxu0 %v400
          %v414 = vpop.f32.mrf.mxu0
          %v415 = vadd.f32 0.0, %v414
          %v416 = vpop.f32.mrf.mxu0
          %417 = vdwg.mxu0
          %s418 = smul.u32 %s25, 8
          %v419 = vlaneseq
          %v420 = vshrl.u32 %v419, 7
          %v421 = vstv %s418
          %v422 = vadd.s32 %v421, %v420
          %s423 = smul.u32 %s26, 8
          %v424 = vlaneseq
          %v425 = vand.u32 %v424, 127
          %v426 = vstv %s423
          %v427 = vadd.s32 %v426, %v425
          %p428 = scmp.lt.s32.totalorder %s26, %s25
          %vm429 = vcmp.le.s32.totalorder %v427, %v422
          %s430 = scalar_select %p428, 1, 0
          %v431 = vstv %s430
          %vm432 = vcmp.eq.s32.totalorder %v431, 1
          %vm433 = vmor %vm432, %vm429
          %v434 = vsel %vm433, %v415, -1e+30
          %v435 = vld [vmem:[#allocation3] sm:$0xff]
          %v436 = vsel %vm398, %v434, -inf
          %437 = vmax.xlane.f32.xlu0 %v436
          %v438 = vpop.xlane.xlu0 %437
          %v439 = vmax.f32 %v435, %v438
          %v440 = vsub.f32 %v435, %v439
          %v441 = vmul.f32 %v440, 1.442695
          %v442 = vpow.pop %v441
          %444 = vset.pattern.permute.xlu0 0
          %445 = vperm.xlu0 %444, %v439
          %v446 = vpop.permute.xlu0 %445
          %v448 = vsub.f32 %v434, %v446
          %v449 = vmul.f32 %v448, 1.442695
          %v450 = vpow.pop %v449
          %v451 = vld [vmem:[#allocation4] sm:$0xff]
          %v452 = vmul.f32 %v442, %v451
          %v453 = vsel %vm398, %v450, 0.0
          %454 = vadd.xlane.f32.xlu0 %v453
          %v455 = vpop.xlane.xlu0 %454
          %v456 = vadd.f32 %v452, %v455
          %vm457 = vcmask 7168
          %458 = vst.msk [vmem:[#allocation4] sm:$0xff] %vm457, %v456
          %v459 = vld [vmem:[#allocation5] sm:$0xff]
          %461 = vset.pattern.permute.xlu0 0
          %462 = vperm.xlu0 %461, %v442
          %v463 = vpop.permute.xlu0 %462
          %v465 = vmul.f32 %v463, %v459
          %v466 = vpack.c.bf16 %v450, %v450
          %v468 = vsel %vm398, %v466, 0
          %vm470 = vcmask 1043456
          %v472 = vsel %vm470, %v396, 0
          %474 = vmatpush.bf16.msra.mxu0 0
          %475 = vmatpush.bf16.msra.mxu0 0
          %476 = vmatpush.bf16.msra.mxu0 0
          %477 = vmatpush.bf16.msra.mxu0 0
          %478 = vmatpush.bf16.msra.mxu0 0
          %479 = vmatpush.bf16.msra.mxu0 0
          %480 = vmatpush.bf16.msra.mxu0 0
          %481 = vmatpush.bf16.msra.mxu0 %v472
          %482 = vmatmul.bf16.gmra.mxu0 %v468
          %v483 = vpop.f32.mrf.mxu0
          %v484 = vadd.f32 0.0, %v483
          %v485 = vpop.f32.mrf.mxu0
          %486 = vdwg.mxu0
          %v487 = vadd.f32 %v465, %v484
          %488 = vst.msk [vmem:[#allocation5] sm:$0xff] %vm398, %v487
          %489 = vst.msk [vmem:[#allocation3] sm:$0xff] %vm457, %v439
        $region48: #{masked_self_attention.1} parent=39 // pred_fallthru
          _
        %p490 = scmp.eq.s32.totalorder %s26, %s25
        // Predicated region
        $region49: #{masked_self_attention.1} parent=39 // pred_check
          %p491 = pneg %p490
        $region50: #{masked_self_attention.1} parent=39 // pred_check_branch
          %493 = sbr.rel (%p491) target = $region52
        $region51: #{masked_self_attention.1} parent=39 // pred_region
          %v494 = vld [vmem:[#allocation4] sm:$0xff]
          %v495 = vrcp.pop %v494
          %v496 = vmul.f32 %v494, %v495
          %v497 = vsub.f32 2.0, %v496
          %v498 = vmul.f32 %v495, %v497
          %v499 = vld [vmem:[#allocation5] sm:$0xff]
          %501 = vset.pattern.permute.xlu0 0
          %502 = vperm.xlu0 %501, %v498
          %v503 = vpop.permute.xlu0 %502
          %v505 = vmul.f32 %v499, %v503
          %vm506 = vcmask 64512
          %507 = vst.msk [vmem:[%s265] sm:$0xff] %vm506, %v505
        $region52: #{masked_self_attention.1} parent=39 // pred_fallthru
          _
        %s508 = sand.u32 %s167, 1
        %s509 = scalar_lea.sflag [#allocation7], %s508
        %s510 = sand.u32 %s167, 1
        %s511 = smul.addr %s510, 8
        %s512 = scalar_lea.vmem [#allocation6], %s511
        // Predicated region
        $region53: #{masked_self_attention.1} parent=39 // pred_check
          %p513 = pneg %p177
        $region54: #{masked_self_attention.1} parent=39 // pred_check_branch
          %515 = sbr.rel (%p513) target = $region56
        $region55: #{masked_self_attention.1} parent=39 // pred_region
          %517 = vsyncadd %s509, 0
          %s518 = sadd.s32 %s25, %s24
          %s519 = smul.addr %s518, 8
          %s520 = scalar_lea.hbm %s5, %s519
          %s522 = sshll.u32 %s512, 4
          %s523 = int_to_ptr.vmem [resolvable:$true] %s522
          %s524 = sshll.u32 %s520, 4
          %s525 = int_to_ptr.hbm [resolvable:$true] %s524
          %527 = dma.vmem_to_hbm [thread:$0]  %s523, 128, %s525, %s509
        $region56: #{masked_self_attention.1} parent=39 // pred_fallthru
          _
      $region40: #{masked_self_attention.1} parent=5 // pred_fallthru
        _
      %p528 = scmp.le.s32.totalorder 2, %s14
      // Predicated region
      $region57: #{masked_self_attention.1} parent=5 // pred_check
        %p529 = pneg %p528
      $region58: #{masked_self_attention.1} parent=5 // pred_check_branch
        %531 = sbr.rel (%p529) target = $region60
      $region59: #{masked_self_attention.1} parent=5 // pred_region
        %s532 = ssub.s32 %s14, 2
        // Predicated region
        $region61: #{masked_self_attention.1} parent=59 // pred_check
          %p533 = pneg %p183
        $region62: #{masked_self_attention.1} parent=59 // pred_check_branch
          %535 = sbr.rel (%p533) target = $region64
        $region63: #{masked_self_attention.1} parent=59 // pred_region
          %s536 = sand.u32 %s168, 1
          %s537 = scalar_lea.sflag [#allocation7], %s536
          %s538 = sand.u32 %s168, 1
          %s539 = smul.addr %s538, 8
          %s540 = scalar_lea.vmem [#allocation6], %s539
          %542 = dma.done %s537, 128
        $region64: #{masked_self_attention.1} parent=59 // pred_fallthru
          _
      $region60: #{masked_self_attention.1} parent=5 // pred_fallthru
        _
    $region6: #{masked_self_attention.1} parent=1 // loop_footer
      %s18 = sadd.s32 1, %s14
    $region7: #{masked_self_attention.1} parent=1 // loop_footer_branch
      %13 = sbr.rel target = $region3
    $region8: #{masked_self_attention.1} parent=1 // loop_exit
      _
    %543 = vsyncpa [#allocation7], 1
    %s544 = scalar_lea.sflag [#allocation7], 1
    %545 = vsyncpa %s544, 1

</llo_original>
